<compile_context>
chip_gen: v7x
topology: tpu7x:2x2x1
jax: 0.10.0
libtpu: 0.0.40
codegen_flags: <defaults>
</compile_context>

<pallas_src>
import jax
import jax.numpy as jnp
import numpy as np
from jax import lax
from jax.experimental import pallas as pl
from jax.experimental.pallas import tpu as pltpu


def _length_regulator_kernel(start_ref, end_ref, x_ref, out_ref):
    # start_ref / end_ref: (1, T) int32 (exclusive / inclusive cumsum of duration)
    # x_ref: (T, H) encoder frames ; out_ref: (TL, H) output-row tile.
    TL = out_ref.shape[0]
    T = x_ref.shape[0]

    # Shift the two (1, T) rows by this tile's row offset instead of adding the
    # offset to the (TL, T) iota (keeps the iota grid-invariant / hoistable).
    shift = pl.program_id(1) * TL
    s = start_ref[...] - shift                                   # (1, T)
    e = end_ref[...] - shift                                     # (1, T)

    # Local target-row indices within this tile.
    j = lax.broadcasted_iota(jnp.int32, (TL, T), 0)              # (TL, T)

    # One-hot expansion: output row j picks source i iff start[i] <= j < end[i].
    # Compares stay in int32 (native VPU); one cast to x.dtype right before the
    # MXU.  Exact even for bf16 x: each output row has at most one nonzero.
    sel = jnp.logical_and(j >= s, j < e).astype(x_ref.dtype)

    out = jnp.dot(sel, x_ref[...], preferred_element_type=jnp.float32)
    out_ref[...] = out.astype(out_ref.dtype)


def length_regulator(x, duration, max_len, *, row_tile=512):
    """JAX/Pallas equivalent of LengthRegulator.forward(x, duration, max_len).

    x: [B, T, H]; duration: [B, T] int; max_len: static Python int (>0).
    Returns (output [B, max_len, H], mel_len [B] int32).
    If sum(duration) > max_len the expansion is truncated to max_len (matches
    the padded/truncated reference semantics of the torch utility).
    """
    B, T, H = x.shape
    max_len = int(max_len)

    # torch's vec.expand(max(int(d), 0), -1) clamps negative durations to 0.
    dur = jnp.maximum(duration.astype(jnp.int32), 0)

    # Exact int32 cumulative sums in the wrapper (cheap XLA ops on [B, T]).
    end = jnp.cumsum(dur, axis=-1)        # inclusive cumsum
    start = end - dur                     # exclusive cumsum
    start3 = start.reshape(B, 1, T)
    end3 = end.reshape(B, 1, T)

    # Output-row tile: large tiles amortize the ~0.35us per-grid-step overhead.
    # A block dim equal to the full array dim is always legal, so a small
    # max_len uses one exact tile; otherwise use row_tile (multiple of 256 for
    # the v6e/v7x MXU) and let Pallas mask the ragged last tile.
    TL = max_len if max_len <= row_tile else row_tile
    n_l = pl.cdiv(max_len, TL)

    # Rough VMEM residency; raise the scoped limit only when the smallest
    # default (16 MiB on v5e) could be exceeded, capped below v7x's 64 MiB.
    itemsize = jnp.dtype(x.dtype).itemsize
    vmem_need = (2 * T * H * itemsize            # x (double-buffered, b-resident)
                 + 2 * TL * H * (itemsize + 4)   # out tiles + f32 accumulator
                 + 2 * TL * T * 4                # sel / iota staging
                 + 4 * 2 * T * 4                 # start/end rows
                 + (2 << 20))                    # slack
    cp_kwargs = {"dimension_semantics": ("parallel", "parallel")}
    if vmem_need > (16 << 20):
        cp_kwargs["vmem_limit_bytes"] = int(min(vmem_need, 48 << 20))

    # TODO(synk): for very long phoneme sequences (T >= ~512-1024) add a
    # scalar-prefetch contraction window (searchsorted block offset per (b, l))
    # to cut the K dimension of the one-hot matmul from T to ~TL+256.
    out = pl.pallas_call(
        _length_regulator_kernel,
        out_shape=jax.ShapeDtypeStruct((B, max_len, H), x.dtype),
        grid_spec=pltpu.PrefetchScalarGridSpec(
            num_scalar_prefetch=0,
            grid=(B, n_l),
            in_specs=[
                # Full-dim blocks (no padding, no final slice).  start/end and
                # the encoder block are constant in l, so they stay resident
                # in VMEM across L-tiles while output tiles pipeline.
                pl.BlockSpec((None, 1, T), lambda b, l: (b, 0, 0)),
                pl.BlockSpec((None, 1, T), lambda b, l: (b, 0, 0)),
                pl.BlockSpec((None, T, H), lambda b, l: (b, 0, 0)),
            ],
            out_specs=pl.BlockSpec((None, TL, H), lambda b, l: (b, l, 0)),
        ),
        compiler_params=pltpu.CompilerParams(**cp_kwargs),
    )(start3, end3, x)

    # mel_len reuses the already-computed cumsum (last column).
    # TODO(synk): torch returns int64 (LongTensor); int32 here (JAX default).
    mel_len = end[:, -1]
    return out, mel_len


if __name__ == "__main__":
    key = jax.random.PRNGKey(0)
    B, T, H = 2, 8, 32
    max_len = 24  # static mel length (>= max possible sum of durations below)

    kx, kd = jax.random.split(key)
    x = jax.random.normal(kx, (B, T, H), dtype=jnp.float32)
    duration = jax.random.randint(kd, (B, T), 0, 4, dtype=jnp.int32)

    out, mel_len = length_regulator(x, duration, max_len)
    out, mel_len = jax.block_until_ready((out, mel_len))

    # Reference: repeat each frame by its duration, concatenate, zero-pad / truncate.
    x_np = np.asarray(x)
    d_np = np.asarray(duration)
    ref = np.zeros((B, max_len, H), np.float32)
    ref_len = d_np.sum(axis=-1)
    for b in range(B):
        exp = np.repeat(x_np[b], d_np[b], axis=0)[:max_len]
        ref[b, : exp.shape[0]] = exp

    assert np.allclose(np.asarray(out), ref, atol=1e-5), "output mismatch"
    assert np.array_equal(np.asarray(mel_len), ref_len), "mel_len mismatch"
    print("KERNEL_OK")
</pallas_src>

<mosaic_0001>
module attributes {stable_mosaic.version = 11 : i64} {
  func.func @_length_regulator_kernel(%arg0: i32, %arg1: i32, %arg2: memref<1x1x8xi32, #tpu.memory_space<vmem>>, %arg3: memref<1x1x8xi32, #tpu.memory_space<vmem>>, %arg4: memref<1x8x32xf32, #tpu.memory_space<vmem>>, %arg5: memref<1x24x32xf32, #tpu.memory_space<vmem>>) attributes {dimension_semantics = [#tpu.dimension_semantics<parallel>, #tpu.dimension_semantics<parallel>], iteration_bounds = array<i64: 2, 1>, scalar_prefetch = 0 : i64, scratch_operands = 0 : i64, tpu.core_type = #tpu.core_type<tc>, window_params = [{transform_indices = @transform_0, window_bounds = array<i64: 1, 1, 8>}, {transform_indices = @transform_1, window_bounds = array<i64: 1, 1, 8>}, {transform_indices = @transform_2, window_bounds = array<i64: 1, 8, 32>}, {transform_indices = @transform_3, window_bounds = array<i64: 1, 24, 32>}]} {
    %c24_i32 = arith.constant 24 : i32
    %0 = arith.muli %arg1, %c24_i32 : i32
    %c0 = arith.constant 0 : index
    %c0_0 = arith.constant 0 : index
    %c0_1 = arith.constant 0 : index
    %1 = vector.load %arg2[%c0, %c0_0, %c0_1] : memref<1x1x8xi32, #tpu.memory_space<vmem>>, vector<1x1x8xi32>
    %2 = vector.shape_cast %1 : vector<1x1x8xi32> to vector<1x8xi32>
    %3 = vector.broadcast %0 : i32 to vector<1x8xi32>
    %4 = arith.subi %2, %3 : vector<1x8xi32>
    %c0_2 = arith.constant 0 : index
    %c0_3 = arith.constant 0 : index
    %c0_4 = arith.constant 0 : index
    %5 = vector.load %arg3[%c0_2, %c0_3, %c0_4] : memref<1x1x8xi32, #tpu.memory_space<vmem>>, vector<1x1x8xi32>
    %6 = vector.shape_cast %5 : vector<1x1x8xi32> to vector<1x8xi32>
    %7 = vector.broadcast %0 : i32 to vector<1x8xi32>
    %8 = arith.subi %6, %7 : vector<1x8xi32>
    %9 = tpu.iota {dimensions = array<i32: 0>} : vector<24x8xi32>
    %10 = vector.broadcast %4 : vector<1x8xi32> to vector<24x8xi32>
    %11 = arith.cmpi sge, %9, %10 : vector<24x8xi32>
    %12 = vector.broadcast %8 : vector<1x8xi32> to vector<24x8xi32>
    %13 = arith.cmpi slt, %9, %12 : vector<24x8xi32>
    %14 = arith.andi %11, %13 : vector<24x8xi1>
    %15 = arith.extui %14 : vector<24x8xi1> to vector<24x8xi32>
    %16 = arith.sitofp %15 : vector<24x8xi32> to vector<24x8xf32>
    %c0_5 = arith.constant 0 : index
    %c0_6 = arith.constant 0 : index
    %c0_7 = arith.constant 0 : index
    %17 = vector.load %arg4[%c0_5, %c0_6, %c0_7] : memref<1x8x32xf32, #tpu.memory_space<vmem>>, vector<1x8x32xf32>
    %18 = vector.shape_cast %17 : vector<1x8x32xf32> to vector<8x32xf32>
    %cst = arith.constant dense<0.000000e+00> : vector<24x32xf32>
    %19 = tpu.matmul %16, %18, %cst {dimension_numbers = #tpu.dot_dimension_numbers<[1], [0], [0], [1], [0, 0, 1, 1], [], []>} : vector<24x8xf32>, vector<8x32xf32>, vector<24x32xf32> -> vector<24x32xf32>
    %c0_8 = arith.constant 0 : index
    %c0_9 = arith.constant 0 : index
    %c0_10 = arith.constant 0 : index
    %20 = vector.load %arg5[%c0_8, %c0_9, %c0_10] : memref<1x24x32xf32, #tpu.memory_space<vmem>>, vector<1x24x32xf32>
    %21 = vector.shape_cast %20 : vector<1x24x32xf32> to vector<24x32xf32>
    %22 = vector.shape_cast %19 : vector<24x32xf32> to vector<1x24x32xf32>
    tpu.vector_store %arg5[%c0_8, %c0_9, %c0_10], %22 {strides = array<i32>} : memref<1x24x32xf32, #tpu.memory_space<vmem>>, vector<1x24x32xf32>,
    return
  }
  func.func @transform_0(%arg0: i32, %arg1: i32) -> (i32, i32, i32) {
    %c0_i32 = arith.constant 0 : i32
    %c0_i32_0 = arith.constant 0 : i32
    %c0_i32_1 = arith.constant 0 : i32
    return %arg0, %c0_i32, %c0_i32_0 : i32, i32, i32
  }
  func.func @transform_1(%arg0: i32, %arg1: i32) -> (i32, i32, i32) {
    %c0_i32 = arith.constant 0 : i32
    %c0_i32_0 = arith.constant 0 : i32
    %c0_i32_1 = arith.constant 0 : i32
    return %arg0, %c0_i32, %c0_i32_0 : i32, i32, i32
  }
  func.func @transform_2(%arg0: i32, %arg1: i32) -> (i32, i32, i32) {
    %c0_i32 = arith.constant 0 : i32
    %c0_i32_0 = arith.constant 0 : i32
    %c0_i32_1 = arith.constant 0 : i32
    return %arg0, %c0_i32, %c0_i32_0 : i32, i32, i32
  }
  func.func @transform_3(%arg0: i32, %arg1: i32) -> (i32, i32, i32) {
    %c0_i32 = arith.constant 0 : i32
    %c0_i32_0 = arith.constant 0 : i32
    return %arg0, %arg1, %c0_i32 : i32, i32, i32
  }
}

</mosaic_0001>

<llo_original>
// kernel: tpu_custom_call.1
$region0: #{tpu_custom_call.1}
  #allocation0 [shape = 'u32[]', space=smem, size = 0x4, offset = 0x4, fixed_abs, tag = 'smem constant byte address 0x4 - core index']
  #allocation1 [shape = 'u32[144,128]{1,0:T(1,128)}', space=vmem, size = 0x12000, scoped, tag = 'internal scratch']
  %s0 = inlined_call_operand.hbm [shape: s32[2,1,8], index: 0, kind: input, shape index: {}]
  %s1 = inlined_call_operand.vmem [shape: s32[2,1,8], index: 1, kind: input, shape index: {}]
  %s2 = inlined_call_operand.hbm [shape: f32[2,8,32], index: 2, kind: input, shape index: {}]
  %s3 = inlined_call_operand.hbm [shape: f32[2,24,32], index: 3, kind: output, shape index: {}]
  %s4 = sld [smem:[#allocation0]]
  $region53: #{tpu_custom_call.1} parent=0
    _
  %s6 = ssub.s32 1, %s4
  %s7 = scalar_select 0, %s6, %s4
  $region1: #{tpu_custom_call.1} parent=0
    #allocation2 [shape = 'u8[1024]{0}', space=vmem, size = 0x400, scoped, tag = 'input window, operand 0']
    #allocation3 [shape = 's32[2]{0}', space=sflag, size = 0x8, scoped, tag = 'scoped memory for tpu_custom_call.1']
    #allocation4 [shape = 's32[2]{0}', space=sflag, size = 0x8, scoped, tag = 'scoped memory for tpu_custom_call.1']
    #allocation5 [shape = 'u8[8192]{0}', space=vmem, size = 0x2000, scoped, tag = 'input window, operand 2']
    #allocation6 [shape = 's32[2]{0}', space=sflag, size = 0x8, scoped, tag = 'scoped memory for tpu_custom_call.1']
    #allocation7 [shape = 'u8[24576]{0}', space=vmem, size = 0x6000, scoped, tag = 'output window, operand 0']
    %8 = vsyncpa [#allocation3], 0
    %s9 = scalar_lea.sflag [#allocation3], 1
    %10 = vsyncpa %s9, 0
    %11 = vsyncpa [#allocation6], 0
    %s12 = scalar_lea.sflag [#allocation6], 1
    %13 = vsyncpa %s12, 0
    %14 = vsyncpa [#allocation4], 0
    %s15 = scalar_lea.sflag [#allocation4], 1
    %16 = vsyncpa %s15, 0
    loop: start=0, step=1, limit=4
    $region2: #{tpu_custom_call.1} parent=1 // loop_pre_header
      _
    $region3: #{tpu_custom_call.1} parent=1 // loop_header
      %s18 = sphi 0, %s22
      %p19 = scmp.ge.s32.totalorder %s18, 4
      %s25 = sphi 0, %s37
      %s26 = sphi 0, %s33
      %s27 = sphi 0, %s25
      %s28 = sphi 0, %s26
      %s29 = sphi 0, %s27
      %s30 = sphi 0, %s28
      %s40 = sphi 0, %s42
      %s43 = sphi 0, %s40
      %s44 = sphi 0, %s43
      %s60 = sphi 0, %s44
      %s66 = sphi 0, %s68
      %s69 = sphi 0, %s66
      %s70 = sphi 0, %s69
      %s86 = sphi 0, %s70
      %s92 = sphi 0, %s94
      %s95 = sphi 0, %s92
      %s96 = sphi 0, %s95
      %s112 = sphi 0, %s96
      %s120 = sphi 0, %s122
      %s123 = sphi 0, %s120
      %s124 = sphi 0, %s123
      %s140 = sphi 0, %s124
    $region4: #{tpu_custom_call.1} parent=1 // loop_header_branch
      %21 = sbr.rel (%p19) target = $region8
    $region5: #{tpu_custom_call.1} parent=1 // loop_body
      %s23 = ssub.s32 %s18, 1
      %s24 = ssub.s32 %s18, 2
      %s31 = sadd.s32 1, %s26
      %p32 = scmp.ge.s32.totalorder %s31, 1
      %s33 = scalar_select %p32, 0, %s31
      %s34 = sadd.s32 1, %s25
      %s35 = scalar_select %p32, %s34, %s25
      %p36 = scmp.ge.s32.totalorder %s35, 2
      %s37 = scalar_select %p36, 0, %s35
      %s38 = ssub.s32 %s25, %s37
      %p39 = scmp.eq.s32.totalorder %s38, 0
      %s41 = sadd.s32 %s40, 1
      %s42 = scalar_select %p39, %s40, %s41
      %p45 = pneg %p39
      %p46 = scmp.eq.s32.totalorder %s18, 1
      %p47 = por %p45, %p46
      %p48 = scmp.ne.s32.totalorder %s40, %s43
      %p49 = scmp.eq.s32.totalorder %s18, 0
      %p50 = por %p48, %p49
      %p51 = scmp.ne.s32.totalorder %s40, %s43
      %p52 = scmp.eq.s32.totalorder %s23, 1
      %p53 = por %p51, %p52
      %p54 = scmp.ne.s32.totalorder %s43, %s44
      %p55 = scmp.eq.s32.totalorder %s23, 0
      %p56 = por %p54, %p55
      %p57 = scmp.ne.s32.totalorder %s43, %s44
      %p58 = scmp.eq.s32.totalorder %s24, 1
      %p59 = por %p57, %p58
      %p61 = scmp.ne.s32.totalorder %s44, %s60
      %p62 = scmp.eq.s32.totalorder %s24, 0
      %p63 = por %p61, %p62
      %s64 = ssub.s32 %s25, %s37
      %p65 = scmp.eq.s32.totalorder %s64, 0
      %s67 = sadd.s32 %s66, 1
      %s68 = scalar_select %p65, %s66, %s67
      %p71 = pneg %p65
      %p72 = scmp.eq.s32.totalorder %s18, 1
      %p73 = por %p71, %p72
      %p74 = scmp.ne.s32.totalorder %s66, %s69
      %p75 = scmp.eq.s32.totalorder %s18, 0
      %p76 = por %p74, %p75
      %p77 = scmp.ne.s32.totalorder %s66, %s69
      %p78 = scmp.eq.s32.totalorder %s23, 1
      %p79 = por %p77, %p78
      %p80 = scmp.ne.s32.totalorder %s69, %s70
      %p81 = scmp.eq.s32.totalorder %s23, 0
      %p82 = por %p80, %p81
      %p83 = scmp.ne.s32.totalorder %s69, %s70
      %p84 = scmp.eq.s32.totalorder %s24, 1
      %p85 = por %p83, %p84
      %p87 = scmp.ne.s32.totalorder %s70, %s86
      %p88 = scmp.eq.s32.totalorder %s24, 0
      %p89 = por %p87, %p88
      %s90 = ssub.s32 %s25, %s37
      %p91 = scmp.eq.s32.totalorder %s90, 0
      %s93 = sadd.s32 %s92, 1
      %s94 = scalar_select %p91, %s92, %s93
      %p97 = pneg %p91
      %p98 = scmp.eq.s32.totalorder %s18, 1
      %p99 = por %p97, %p98
      %p100 = scmp.ne.s32.totalorder %s92, %s95
      %p101 = scmp.eq.s32.totalorder %s18, 0
      %p102 = por %p100, %p101
      %p103 = scmp.ne.s32.totalorder %s92, %s95
      %p104 = scmp.eq.s32.totalorder %s23, 1
      %p105 = por %p103, %p104
      %p106 = scmp.ne.s32.totalorder %s95, %s96
      %p107 = scmp.eq.s32.totalorder %s23, 0
      %p108 = por %p106, %p107
      %p109 = scmp.ne.s32.totalorder %s95, %s96
      %p110 = scmp.eq.s32.totalorder %s24, 1
      %p111 = por %p109, %p110
      %p113 = scmp.ne.s32.totalorder %s96, %s112
      %p114 = scmp.eq.s32.totalorder %s24, 0
      %p115 = por %p113, %p114
      %s116 = ssub.s32 %s25, %s37
      %s117 = ssub.s32 %s26, %s33
      %s118 = sor.u32 %s116, %s117
      %p119 = scmp.eq.s32.totalorder %s118, 0
      %s121 = sadd.s32 %s120, 1
      %s122 = scalar_select %p119, %s120, %s121
      %p125 = pneg %p119
      %p126 = scmp.eq.s32.totalorder %s18, 1
      %p127 = por %p125, %p126
      %p128 = scmp.ne.s32.totalorder %s120, %s123
      %p129 = scmp.eq.s32.totalorder %s18, 0
      %p130 = por %p128, %p129
      %p131 = scmp.ne.s32.totalorder %s120, %s123
      %p132 = scmp.eq.s32.totalorder %s23, 1
      %p133 = por %p131, %p132
      %p134 = scmp.ne.s32.totalorder %s123, %s124
      %p135 = scmp.eq.s32.totalorder %s23, 0
      %p136 = por %p134, %p135
      %p137 = scmp.ne.s32.totalorder %s123, %s124
      %p138 = scmp.eq.s32.totalorder %s24, 1
      %p139 = por %p137, %p138
      %p141 = scmp.ne.s32.totalorder %s124, %s140
      %p142 = scmp.eq.s32.totalorder %s24, 0
      %p143 = por %p141, %p142
      %p144 = scmp.le.s32.totalorder 1, %s18
      %p145 = scmp.lt.s32.totalorder %s18, 3
      %p146 = pnand %p144, %p145
      %p147 = pneg %p146
      // Predicated region
      $region9: #{tpu_custom_call.1} parent=5 // pred_check
        _
      $region10: #{tpu_custom_call.1} parent=5 // pred_check_branch
        %149 = sbr.rel (%p146) target = $region12
      $region11: #{tpu_custom_call.1} parent=5 // pred_region
        %s150 = ssub.s32 %s18, 1
      $region12: #{tpu_custom_call.1} parent=5 // pred_fallthru
        _
      %p151 = scmp.lt.s32.totalorder %s18, 2
      // Predicated region
      $region13: #{tpu_custom_call.1} parent=5 // pred_check
        %p152 = pneg %p151
      $region14: #{tpu_custom_call.1} parent=5 // pred_check_branch
        %154 = sbr.rel (%p152) target = $region16
      $region15: #{tpu_custom_call.1} parent=5 // pred_region
        // Predicated region
        $region17: #{tpu_custom_call.1} parent=15 // pred_check
          %p155 = pneg %p50
        $region18: #{tpu_custom_call.1} parent=15 // pred_check_branch
          %157 = sbr.rel (%p155) target = $region20
        $region19: #{tpu_custom_call.1} parent=15 // pred_region
          %s158 = sand.u32 %s40, 1
          %s159 = scalar_lea.sflag [#allocation3], %s158
          %s160 = sand.u32 %s40, 1
          %s161 = scalar_lea.vmem [#allocation2], %s160
          %s163 = ssub.s32 16, 16
          %164 = vsyncadd %s159, %s163
          %s165 = smul.addr %s25, 16
          %s166 = scalar_lea.hbm %s0, %s165
          %s168 = sshll.u32 %s161, 4
          %s169 = int_to_ptr.vmem [resolvable:$true] %s168
          %171 = dma.hbm_to_vmem [thread:$0]  %s166, 16, %s169, %s159
        $region20: #{tpu_custom_call.1} parent=15 // pred_fallthru
          _
        // Predicated region
        $region21: #{tpu_custom_call.1} parent=15 // pred_check
          %p172 = pneg %p76
        $region22: #{tpu_custom_call.1} parent=15 // pred_check_branch
          %174 = sbr.rel (%p172) target = $region24
        $region23: #{tpu_custom_call.1} parent=15 // pred_region
          %p175 = scmp.lt.s32.totalorder %s25, 1
          %s176 = scalar_select %p175, %s25, 1
          %s177 = scalar_lea.vmem %s1, %s176
        $region24: #{tpu_custom_call.1} parent=15 // pred_fallthru
          _
        // Predicated region
        $region25: #{tpu_custom_call.1} parent=15 // pred_check
          %p178 = pneg %p102
        $region26: #{tpu_custom_call.1} parent=15 // pred_check_branch
          %180 = sbr.rel (%p178) target = $region28
        $region27: #{tpu_custom_call.1} parent=15 // pred_region
          %s181 = sand.u32 %s92, 1
          %s182 = scalar_lea.sflag [#allocation6], %s181
          %s183 = sand.u32 %s92, 1
          %s184 = smul.addr %s183, 8
          %s185 = scalar_lea.vmem [#allocation5], %s184
          %s187 = ssub.s32 128, 128
          %188 = vsyncadd %s182, %s187
          %s189 = smul.addr %s25, 128
          %s190 = scalar_lea.hbm %s2, %s189
          %s192 = sshll.u32 %s185, 4
          %s193 = int_to_ptr.vmem [resolvable:$true] %s192
          %195 = dma.hbm_to_vmem [thread:$0]  %s190, 128, %s193, %s182
        $region28: #{tpu_custom_call.1} parent=15 // pred_fallthru
          _
      $region16: #{tpu_custom_call.1} parent=5 // pred_fallthru
        _
      %p196 = scmp.le.s32.totalorder 1, %s18
      %p197 = scmp.lt.s32.totalorder %s18, 3
      %p198 = pnand %p196, %p197
      %p199 = pneg %p198
      // Predicated region
      $region29: #{tpu_custom_call.1} parent=5 // pred_check
        _
      $region30: #{tpu_custom_call.1} parent=5 // pred_check_branch
        %201 = sbr.rel (%p198) target = $region32
      $region31: #{tpu_custom_call.1} parent=5 // pred_region
        %s202 = ssub.s32 %s18, 1
        %s203 = sand.u32 %s43, 1
        %s204 = scalar_lea.sflag [#allocation3], %s203
        %s205 = sand.u32 %s43, 1
        %s206 = scalar_lea.vmem [#allocation2], %s205
        // Predicated region
        $region33: #{tpu_custom_call.1} parent=31 // pred_check
          %p207 = pneg %p56
        $region34: #{tpu_custom_call.1} parent=31 // pred_check_branch
          %209 = sbr.rel (%p207) target = $region36
        $region35: #{tpu_custom_call.1} parent=31 // pred_region
          %210 = dma.done %s204, 16
        $region36: #{tpu_custom_call.1} parent=31 // pred_fallthru
          _
        %s211 = sand.u32 %s95, 1
        %s212 = scalar_lea.sflag [#allocation6], %s211
        %s213 = sand.u32 %s95, 1
        %s214 = smul.addr %s213, 8
        %s215 = scalar_lea.vmem [#allocation5], %s214
        // Predicated region
        $region37: #{tpu_custom_call.1} parent=31 // pred_check
          %p216 = pneg %p108
        $region38: #{tpu_custom_call.1} parent=31 // pred_check_branch
          %218 = sbr.rel (%p216) target = $region40
        $region39: #{tpu_custom_call.1} parent=31 // pred_region
          %219 = dma.done %s212, 128
        $region40: #{tpu_custom_call.1} parent=31 // pred_fallthru
          _
        %s220 = sand.u32 %s43, 1
        %s221 = scalar_lea.sflag [#allocation3], %s220
        %s222 = sand.u32 %s43, 1
        %s223 = scalar_lea.vmem [#allocation2], %s222
        %p224 = pneg %p56
        %p225 = pneg %p53
        %p226 = scmp.lt.s32.totalorder %s27, 1
        %s227 = scalar_select %p226, %s27, 1
        %s228 = scalar_lea.vmem %s1, %s227
        %p229 = pneg %p82
        %p230 = pneg %p79
        %s231 = sand.u32 %s95, 1
        %s232 = scalar_lea.sflag [#allocation6], %s231
        %s233 = sand.u32 %s95, 1
        %s234 = smul.addr %s233, 8
        %s235 = scalar_lea.vmem [#allocation5], %s234
        %p236 = pneg %p108
        %p237 = pneg %p105
        %p238 = pneg %p136
        %p239 = pneg %p133
        %s240 = sand.u32 %s123, 1
        %s241 = scalar_lea.sflag [#allocation4], %s240
        %s242 = sand.u32 %s123, 1
        %s243 = smul.addr %s242, 24
        %s244 = scalar_lea.vmem [#allocation7], %s243
        %p245 = scmp.lt.s32.totalorder %s27, 1
        %s246 = scalar_select %p245, %s27, 1
        %s247 = scalar_lea.vmem %s1, %s246
        %s248 = smul.u32 3, %s28
        %s249 = smul.u32 %s28, 24
        %v250 = vld [vmem:[%s206] sm:$0x1]
        %v251 = vstv %s249
        %v252 = vsub.s32 %v250, %v251
        %v253 = vld [vmem:[%s247] sm:$0x1]
        %v254 = vsub.s32 %v253, %v251
        %v255 = vlaneseq
        %v256 = vshrl.u32 %v255, 7
        %v257 = vadd.s32 %v256, 8
        %v258 = vadd.s32 %v256, 16
        %v259 = vlaneseq
        %v260 = vshrl.u32 %v259, 7
        %v261 = vsub.s32 0, %v260
        %v262 = vrot.slane %v252, %v261
        %vm263 = vcmp.ge.s32.totalorder %v256, %v262
        %vm264 = vcmp.ge.s32.totalorder %v257, %v262
        %vm265 = vcmp.ge.s32.totalorder %v258, %v262
        %v266 = vlaneseq
        %v267 = vshrl.u32 %v266, 7
        %v268 = vsub.s32 0, %v267
        %v269 = vrot.slane %v254, %v268
        %vm270 = vcmp.lt.s32.totalorder %v256, %v269
        %vm271 = vcmp.lt.s32.totalorder %v257, %v269
        %vm272 = vcmp.lt.s32.totalorder %v258, %v269
        %vm273 = vmand %vm263, %vm270
        %vm274 = vmand %vm264, %vm271
        %vm275 = vmand %vm265, %vm272
        %v276 = vsel %vm273, 1, 0
        %v277 = vsel %vm274, 1, 0
        %v278 = vsel %vm275, 1, 0
        %v279 = vcvt.s32.f32 %v276
        %v280 = vcvt.s32.f32 %v277
        %v281 = vcvt.s32.f32 %v278
        %v282 = vld [vmem:[%s215] sm:$0xff]
        %vm283 = vcmask 64512
        %v285 = vsel %vm283, %v279, 0
        %v288 = vsel %vm283, %v280, 0
        %v291 = vsel %vm283, %v281, 0
        %293 = vmatprep.subr.mxu0 0.0
        %294 = vmatpush1.msra.mxu0 %v282
        %295 = vmatprep.subr.mxu0 0.0
        %296 = vmatpush1.msra.mxu0 0.0
        %297 = vmatprep.subr.mxu0 0.0
        %298 = vmatpush1.msra.mxu0 0.0
        %299 = vmatprep.subr.mxu0 0.0
        %300 = vmatpush1.msra.mxu0 0.0
        %301 = vmatprep.subr.mxu0 0.0
        %302 = vmatpush1.msra.mxu0 0.0
        %303 = vmatprep.subr.mxu0 0.0
        %304 = vmatpush1.msra.mxu0 0.0
        %305 = vmatprep.subr.mxu0 0.0
        %306 = vmatpush1.msra.mxu0 0.0
        %307 = vmatprep.subr.mxu0 0.0
        %308 = vmatpush1.msra.mxu0 0.0
        %309 = vmatprep.subr.mxu0 0.0
        %310 = vmatpush1.msra.mxu0 0.0
        %311 = vmatprep.subr.mxu0 0.0
        %312 = vmatpush1.msra.mxu0 0.0
        %313 = vmatprep.subr.mxu0 0.0
        %314 = vmatpush1.msra.mxu0 0.0
        %315 = vmatprep.subr.mxu0 0.0
        %316 = vmatpush1.msra.mxu0 0.0
        %317 = vmatprep.subr.mxu0 0.0
        %318 = vmatpush1.msra.mxu0 0.0
        %319 = vmatprep.subr.mxu0 0.0
        %320 = vmatpush1.msra.mxu0 0.0
        %321 = vmatprep.subr.mxu0 0.0
        %322 = vmatpush1.msra.mxu0 0.0
        %323 = vmatprep.subr.mxu0 0.0
        %324 = vmatpush1.msra.mxu0 0.0
        %325 = vmatprep.subr.mxu0 0.0
        %326 = vmatpush1.msra.mxu0 0.0
        %327 = vmatprep.subr.mxu0 0.0
        %328 = vmatpush1.msra.mxu0 0.0
        %329 = vmatprep.subr.mxu0 0.0
        %330 = vmatpush1.msra.mxu0 0.0
        %331 = vmatprep.subr.mxu0 0.0
        %332 = vmatpush1.msra.mxu0 0.0
        %333 = vmatprep.subr.mxu0 0.0
        %334 = vmatpush1.msra.mxu0 0.0
        %335 = vmatprep.subr.mxu0 0.0
        %336 = vmatpush1.msra.mxu0 0.0
        %337 = vmatprep.subr.mxu0 0.0
        %338 = vmatpush1.msra.mxu0 0.0
        %339 = vmatprep.subr.mxu0 0.0
        %340 = vmatpush1.msra.mxu0 0.0
        %341 = vmatprep.subr.mxu0 0.0
        %342 = vmatpush1.msra.mxu0 0.0
        %343 = vmatprep.subr.mxu0 0.0
        %344 = vmatpush1.msra.mxu0 0.0
        %345 = vmatprep.subr.mxu0 0.0
        %346 = vmatpush1.msra.mxu0 0.0
        %347 = vmatprep.subr.mxu0 0.0
        %348 = vmatpush1.msra.mxu0 0.0
        %349 = vmatprep.subr.mxu0 0.0
        %350 = vmatpush1.msra.mxu0 0.0
        %351 = vmatprep.subr.mxu0 0.0
        %352 = vmatpush1.msra.mxu0 0.0
        %353 = vmatprep.subr.mxu0 0.0
        %354 = vmatpush1.msra.mxu0 0.0
        %355 = vmatprep.subr.mxu0 0.0
        %356 = vmatpush1.msra.mxu0 0.0
        %357 = vmatprep.mubr.f32.mxu0 0.0
        %358 = vmatmul.mubr.f32.gmra.mrb[0].mxu0 %v285
        %v359 = vpop.f32.mrb[0].mxu0
        %v360 = vadd.f32 0.0, %v359
        %v361 = vpop.f32.mrb[0].mxu0
        %362 = vmatprep.mubr.f32.mxu0 0.0
        %363 = vmatmul.mubr.f32.gmra.mrb[0].mxu0 %v288
        %v364 = vpop.f32.mrb[0].mxu0
        %v365 = vadd.f32 0.0, %v364
        %v366 = vpop.f32.mrb[0].mxu0
        %367 = vmatprep.mubr.f32.mxu0 0.0
        %368 = vmatmul.mubr.f32.gmra.mrb[0].mxu0 %v291
        %v369 = vpop.f32.mrb[0].mxu0
        %v370 = vadd.f32 0.0, %v369
        %v371 = vpop.f32.mrb[0].mxu0
        %372 = vdwg.mxu0
        %vm373 = vcmask 261120
        %374 = vst.msk [vmem:[%s244] sm:$0xff] %vm373, %v360
        %375 = vst.msk [vmem:[%s244 + $0x8] sm:$0xff] %vm373, %v365
        %376 = vst.msk [vmem:[%s244 + $0x10] sm:$0xff] %vm373, %v370
        %s377 = sand.u32 %s123, 1
        %s378 = scalar_lea.sflag [#allocation4], %s377
        %s379 = sand.u32 %s123, 1
        %s380 = smul.addr %s379, 24
        %s381 = scalar_lea.vmem [#allocation7], %s380
        // Predicated region
        $region41: #{tpu_custom_call.1} parent=31 // pred_check
          %p382 = pneg %p133
        $region42: #{tpu_custom_call.1} parent=31 // pred_check_branch
          %384 = sbr.rel (%p382) target = $region44
        $region43: #{tpu_custom_call.1} parent=31 // pred_region
          %s385 = smul.u32 3, %s28
          %s387 = ssub.s32 384, 384
          %388 = vsyncadd %s378, %s387
          %s389 = smul.addr %s27, 3
          %s390 = sadd.s32 %s385, %s389
          %s391 = smul.addr %s390, 128
          %s392 = scalar_lea.hbm %s3, %s391
          %s393 = sshll.u32 %s381, 4
          %s394 = int_to_ptr.vmem [resolvable:$true] %s393
          %399 = dma.vmem_to_hbm [thread:$0]  %s394, 384, %s392, %s378, 128, 128, 8
        $region44: #{tpu_custom_call.1} parent=31 // pred_fallthru
          _
      $region32: #{tpu_custom_call.1} parent=5 // pred_fallthru
        _
      %p400 = scmp.le.s32.totalorder 2, %s18
      // Predicated region
      $region45: #{tpu_custom_call.1} parent=5 // pred_check
        %p401 = pneg %p400
      $region46: #{tpu_custom_call.1} parent=5 // pred_check_branch
        %403 = sbr.rel (%p401) target = $region48
      $region47: #{tpu_custom_call.1} parent=5 // pred_region
        %s404 = ssub.s32 %s18, 2
        // Predicated region
        $region49: #{tpu_custom_call.1} parent=47 // pred_check
          %p405 = pneg %p139
        $region50: #{tpu_custom_call.1} parent=47 // pred_check_branch
          %407 = sbr.rel (%p405) target = $region52
        $region51: #{tpu_custom_call.1} parent=47 // pred_region
          %s408 = sand.u32 %s124, 1
          %s409 = scalar_lea.sflag [#allocation4], %s408
          %s410 = sand.u32 %s124, 1
          %s411 = smul.addr %s410, 24
          %s412 = scalar_lea.vmem [#allocation7], %s411
          %413 = dma.done %s409, 384
        $region52: #{tpu_custom_call.1} parent=47 // pred_fallthru
          _
      $region48: #{tpu_custom_call.1} parent=5 // pred_fallthru
        _
    $region6: #{tpu_custom_call.1} parent=1 // loop_footer
      %s22 = sadd.s32 1, %s18
    $region7: #{tpu_custom_call.1} parent=1 // loop_footer_branch
      %17 = sbr.rel target = $region3
    $region8: #{tpu_custom_call.1} parent=1 // loop_exit
      _
    %414 = vsyncpa [#allocation3], 1
    %s415 = scalar_lea.sflag [#allocation3], 1
    %416 = vsyncpa %s415, 1
    %417 = vsyncpa [#allocation6], 1
    %s418 = scalar_lea.sflag [#allocation6], 1
    %419 = vsyncpa %s418, 1
    %420 = vsyncpa [#allocation4], 1
    %s421 = scalar_lea.sflag [#allocation4], 1
    %422 = vsyncpa %s421, 1

</llo_original>
